<compile_context>
chip_gen: v7x
topology: tpu7x:2x2x1
jax: 0.10.0
libtpu: 0.0.40
codegen_flags: <defaults>
</compile_context>

<pallas_src>
import functools

import jax
import jax.numpy as jnp
import numpy as np
from jax.experimental import pallas as pl
from jax.experimental.pallas import tpu as pltpu

IN_DIM = 4          # fc1 in_features  (= num_labels of the backbone)
HIDDEN = 512        # fc1 out / fc2 in
NUM_CLASSES = 2     # fc2 out_features
OUT_PAD = 128       # lane-dense padded output width
DROP_P = 0.1
_DROP_THRESH_31 = int(round(DROP_P * float(2 ** 31)))   # drop if u31 < thresh
_NEG_INF = -1e30


def _round_up(x, m):
    return (x + m - 1) // m * m


def _choose_tile(batch, block_batch):
    """Batch-tile rows: >=2 tiles when possible (v7x has 2 TensorCores and the
    grid axis is 'parallel'); rounded to 16 so the bf16 output tile is always
    packing-aligned."""
    half = -(-batch // 2)          # ceil(batch / 2)
    return max(16, min(block_batch, _round_up(half, 16)))


def _log_softmax_lastdim(logits):
    # Pad lanes already carry -1e30 (baked into b2p), so no extra masking here.
    m = jnp.max(logits, axis=-1, keepdims=True)
    z = logits - m
    lse = jnp.log(jnp.sum(jnp.exp(z), axis=-1, keepdims=True))
    return z - lse


def _dropout_keep_mask(seed, tile_row0, shape):
    """Counter-based hash (SplitMix32-style) keep-mask using only portable
    integer VPU ops (no TPU-only PRNG primitives -> works on TPU + interpret).

    Stream depends only on (seed, global row, col), so it is tiling-invariant.
    NOTE: the caller must supply a different seed every training step or the
    dropout mask repeats exactly.
    """
    r = jax.lax.broadcasted_iota(jnp.int32, shape, 0)
    c = jax.lax.broadcasted_iota(jnp.int32, shape, 1)
    ctr = (tile_row0 + r) * jnp.int32(shape[1]) + c
    ctr = ctr + seed * jnp.int32(-1640531527)           # seed * golden (wraps)
    x = jax.lax.bitcast_convert_type(ctr, jnp.uint32)
    x = (x ^ (x >> 16)) * jnp.uint32(0x7FEB352D)
    x = (x ^ (x >> 15)) * jnp.uint32(0x846CA68B)
    x = x ^ (x >> 16)
    u31 = jax.lax.bitcast_convert_type(x, jnp.int32) & jnp.int32(0x7FFFFFFF)
    return u31 >= jnp.int32(_DROP_THRESH_31)


def _head_kernel_eval(x_ref, w1_ref, b1_ref, w2_ref, b2_ref, o_ref):
    # fc1: tiny K=4 f32 matmul; bias/ReLU in f32 vregs (v5e-safe).
    h = jnp.dot(x_ref[...], w1_ref[...], preferred_element_type=jnp.float32)
    h = jnp.maximum(h + b1_ref[...], 0.0)
    # (eval mode: dropout is the identity — no mask, no select)
    logits = jnp.dot(h.astype(jnp.bfloat16), w2_ref[...],
                     preferred_element_type=jnp.float32) + b2_ref[...]
    o_ref[...] = _log_softmax_lastdim(logits).astype(o_ref.dtype)


def _head_kernel_train(seed_ref, x_ref, w1_ref, b1_ref, w2_ref, b2_ref, o_ref):
    h = jnp.dot(x_ref[...], w1_ref[...], preferred_element_type=jnp.float32)
    h = jnp.maximum(h + b1_ref[...], 0.0)
    tm = h.shape[0]
    keep = _dropout_keep_mask(seed_ref[0], pl.program_id(0) * tm, h.shape)
    # Inverted-dropout scale 1/(1-p) is pre-folded into w2_ref by the wrapper,
    # so the kernel only selects (no per-element multiply).
    h = jnp.where(keep, h, 0.0)
    logits = jnp.dot(h.astype(jnp.bfloat16), w2_ref[...],
                     preferred_element_type=jnp.float32) + b2_ref[...]
    o_ref[...] = _log_softmax_lastdim(logits).astype(o_ref.dtype)


@functools.partial(jax.jit, static_argnames=("training", "block_batch"))
def bert_head_forward(cls_hs, w1p, b1p, w2p, b2p, seed,
                      *, training=False, block_batch=1024):
    """Fused fc1->ReLU->dropout->fc2->log_softmax.  Returns [B, NUM_CLASSES] f32.

    w1p: [IN_DIM, HIDDEN]  f32
    b1p: [1, HIDDEN]       f32
    w2p: [HIDDEN, OUT_PAD] bf16 (cols >= NUM_CLASSES are zero)
    b2p: [1, OUT_PAD]      f32  (cols >= NUM_CLASSES are -1e30: class-pad mask)
    """
    B = cls_hs.shape[0]
    tm = _choose_tile(B, block_batch)
    grid = (pl.cdiv(B, tm),)
    x = cls_hs.astype(jnp.float32)

    def row_map(i, *_):       # batch-tiled arrays (prefetch refs ignored)
        return (i, 0)

    def const_map(i, *_):     # weights resident in VMEM (fetched once)
        return (0, 0)

    w2_used = w2p
    if training:
        # fold the inverted-dropout scale into fc2 weights (pad cols stay 0)
        w2_used = (w2p.astype(jnp.float32)
                   * jnp.float32(1.0 / (1.0 - DROP_P))).astype(jnp.bfloat16)

    in_specs = [
        pl.BlockSpec((tm, IN_DIM), row_map),
        pl.BlockSpec((IN_DIM, HIDDEN), const_map),
        pl.BlockSpec((1, HIDDEN), const_map),
        pl.BlockSpec((HIDDEN, OUT_PAD), const_map),
        pl.BlockSpec((1, OUT_PAD), const_map),
    ]
    out_spec = pl.BlockSpec((tm, OUT_PAD), row_map)
    # bf16 padded output: halves the dominant HBM write + wrapper-slice read.
    out_shape = jax.ShapeDtypeStruct((B, OUT_PAD), jnp.bfloat16)

    cost = pl.CostEstimate(
        flops=2 * B * (IN_DIM * HIDDEN + HIDDEN * OUT_PAD),
        transcendentals=B * OUT_PAD,
        bytes_accessed=(B * IN_DIM * 4 + IN_DIM * HIDDEN * 4 + HIDDEN * 4
                        + HIDDEN * OUT_PAD * 2 + OUT_PAD * 4
                        + B * OUT_PAD * 2),
    )
    cparams = pltpu.CompilerParams(dimension_semantics=("parallel",),
                                   vmem_limit_bytes=32 * 1024 * 1024)

    if training:
        seed_arr = jnp.reshape(jnp.asarray(seed, dtype=jnp.int32), (1,))
        grid_spec = pltpu.PrefetchScalarGridSpec(
            num_scalar_prefetch=1, grid=grid,
            in_specs=in_specs, out_specs=out_spec)
        out = pl.pallas_call(
            _head_kernel_train, out_shape=out_shape, grid_spec=grid_spec,
            compiler_params=cparams, cost_estimate=cost,
        )(seed_arr, x, w1p, b1p, w2_used, b2p)
    else:
        grid_spec = pltpu.PrefetchScalarGridSpec(
            num_scalar_prefetch=0, grid=grid,
            in_specs=in_specs, out_specs=out_spec)
        out = pl.pallas_call(
            _head_kernel_eval, out_shape=out_shape, grid_spec=grid_spec,
            compiler_params=cparams, cost_estimate=cost,
        )(x, w1p, b1p, w2_used, b2p)

    return out[:, :NUM_CLASSES].astype(jnp.float32)


# ----------------------------------------------------------------------------
# Pure-JAX glue: parameter init, backbone stand-in, reference head for checks.
# ----------------------------------------------------------------------------

def init_head_params(key):
    k1, k2, k3, k4 = jax.random.split(key, 4)
    w1 = 0.1 * jax.random.normal(k1, (IN_DIM, HIDDEN), jnp.float32)
    b1 = 0.05 * jax.random.normal(k2, (HIDDEN,), jnp.float32)
    w2 = 0.1 * jax.random.normal(k3, (HIDDEN, NUM_CLASSES), jnp.float32)
    b2 = 0.05 * jax.random.normal(k4, (NUM_CLASSES,), jnp.float32)
    return w1, b1, w2, b2


def pad_head_params(w1, b1, w2, b2):
    w1p = w1.astype(jnp.float32)                                  # [4, 512]
    b1p = b1.reshape(1, HIDDEN).astype(jnp.float32)
    w2p = (jnp.zeros((HIDDEN, OUT_PAD), jnp.float32)
           .at[:, :NUM_CLASSES].set(w2)).astype(jnp.bfloat16)
    # class-pad mask baked into the bias: pad logits become exactly -1e30
    b2p = (jnp.full((1, OUT_PAD), _NEG_INF, jnp.float32)
           .at[0, :NUM_CLASSES].set(b2))
    return w1p, b1p, w2p, b2p


def synthetic_cls_logits(input_ids, attention_mask, token_type_ids):
    # TODO(synk): BertForSequenceClassification backbone is not translated to
    # Pallas; this deterministic stand-in produces the [B, 4] `outputs.logits`.
    x = input_ids.astype(jnp.float32) + 0.1 * token_type_ids.astype(jnp.float32)
    x = x * attention_mask.astype(jnp.float32)
    proj = 0.01 * jax.random.normal(jax.random.PRNGKey(42),
                                    (x.shape[1], IN_DIM), jnp.float32)
    return jnp.tanh(x @ proj)


def reference_head_eval(cls_hs, w1, b1, w2, b2):
    """Pure-JAX f32 reference (eval mode, dropout = identity)."""
    h = jnp.maximum(cls_hs @ w1 + b1, 0.0)
    return jax.nn.log_softmax(h @ w2 + b2, axis=-1)


if __name__ == "__main__":
    key = jax.random.PRNGKey(0)
    k_ids, k_lab, k_params, k_big = jax.random.split(key, 4)

    # Small shapes consistent with the module's forward signature.
    B, S = 16, 8
    input_ids = jax.random.randint(k_ids, (B, S), 0, 30000, dtype=jnp.int32)
    attention_mask = jnp.ones((B, S), jnp.int32)
    token_type_ids = jnp.zeros((B, S), jnp.int32)
    labels = jax.random.randint(k_lab, (B,), 0, NUM_CLASSES, dtype=jnp.int32)
    del labels  # only consumed by the (untranslated) backbone loss path

    cls_hs = synthetic_cls_logits(input_ids, attention_mask, token_type_ids)

    w1, b1, w2, b2 = init_head_params(k_params)
    w1p, b1p, w2p, b2p = pad_head_params(w1, b1, w2, b2)

    # Eval mode (dropout = identity): check against the pure-JAX reference.
    # Tolerance covers bf16 fc2 operands + the bf16 output store.
    out_eval = bert_head_forward(cls_hs, w1p, b1p, w2p, b2p, 0, training=False)
    out_eval = jax.block_until_ready(out_eval)
    ref = jax.block_until_ready(reference_head_eval(cls_hs, w1, b1, w2, b2))
    np.testing.assert_allclose(np.asarray(out_eval), np.asarray(ref),
                               atol=2e-2, rtol=2e-2)

    # Training mode with in-kernel hash dropout; larger batch exercises the
    # multi-tile "parallel" grid (2 tiles of 512 rows).
    big_cls = 0.5 * jax.random.normal(k_big, (1024, IN_DIM), jnp.float32)
    out_train = bert_head_forward(big_cls, w1p, b1p, w2p, b2p, 123,
                                  training=True)
    out_train = jax.block_until_ready(out_train)
    assert out_train.shape == (1024, NUM_CLASSES)
    # log_softmax rows must be proper log-probabilities: logsumexp == 0.
    lse = jax.scipy.special.logsumexp(out_train, axis=-1)
    assert np.allclose(np.asarray(lse), 0.0, atol=3e-2)
    assert np.all(np.isfinite(np.asarray(out_train)))

    print("KERNEL_OK")
</pallas_src>

<mosaic_0001>
module attributes {stable_mosaic.version = 11 : i64} {
  func.func @_head_kernel_eval(%arg0: i32, %arg1: memref<16x4xf32, #tpu.memory_space<vmem>>, %arg2: memref<4x512xf32, #tpu.memory_space<vmem>>, %arg3: memref<1x512xf32, #tpu.memory_space<vmem>>, %arg4: memref<512x128xbf16, #tpu.memory_space<vmem>>, %arg5: memref<1x128xf32, #tpu.memory_space<vmem>>, %arg6: memref<16x128xbf16, #tpu.memory_space<vmem>>) attributes {dimension_semantics = [#tpu.dimension_semantics<parallel>], iteration_bounds = array<i64: 1>, scalar_prefetch = 0 : i64, scratch_operands = 0 : i64, tpu.core_type = #tpu.core_type<tc>, window_params = [{transform_indices = @transform_0, window_bounds = array<i64: 16, 4>}, {pipeline_mode = #tpu.pipeline_mode<synchronous>, transform_indices = @transform_1, window_bounds = array<i64: 4, 512>}, {pipeline_mode = #tpu.pipeline_mode<synchronous>, transform_indices = @transform_2, window_bounds = array<i64: 1, 512>}, {pipeline_mode = #tpu.pipeline_mode<synchronous>, transform_indices = @transform_3, window_bounds = array<i64: 512, 128>}, {pipeline_mode = #tpu.pipeline_mode<synchronous>, transform_indices = @transform_4, window_bounds = array<i64: 1, 128>}, {transform_indices = @transform_5, window_bounds = array<i64: 16, 128>}]} {
    %c0 = arith.constant 0 : index
    %c0_0 = arith.constant 0 : index
    %0 = vector.load %arg1[%c0, %c0_0] : memref<16x4xf32, #tpu.memory_space<vmem>>, vector<16x4xf32>
    %c0_1 = arith.constant 0 : index
    %c0_2 = arith.constant 0 : index
    %1 = vector.load %arg2[%c0_1, %c0_2] : memref<4x512xf32, #tpu.memory_space<vmem>>, vector<4x512xf32>
    %cst = arith.constant dense<0.000000e+00> : vector<16x512xf32>
    %2 = tpu.matmul %0, %1, %cst {dimension_numbers = #tpu.dot_dimension_numbers<[1], [0], [0], [1], [0, 0, 1, 1], [], []>} : vector<16x4xf32>, vector<4x512xf32>, vector<16x512xf32> -> vector<16x512xf32>
    %c0_3 = arith.constant 0 : index
    %c0_4 = arith.constant 0 : index
    %3 = vector.load %arg3[%c0_3, %c0_4] : memref<1x512xf32, #tpu.memory_space<vmem>>, vector<1x512xf32>
    %4 = vector.broadcast %3 : vector<1x512xf32> to vector<16x512xf32>
    %5 = arith.addf %2, %4 : vector<16x512xf32>
    %cst_5 = arith.constant 0.000000e+00 : f32
    %6 = vector.broadcast %cst_5 : f32 to vector<16x512xf32>
    %7 = arith.maximumf %5, %6 : vector<16x512xf32>
    %8 = arith.truncf %7 : vector<16x512xf32> to vector<16x512xbf16>
    %c0_6 = arith.constant 0 : index
    %c0_7 = arith.constant 0 : index
    %9 = vector.load %arg4[%c0_6, %c0_7] : memref<512x128xbf16, #tpu.memory_space<vmem>>, vector<512x128xbf16>
    %cst_8 = arith.constant dense<0.000000e+00> : vector<16x128xf32>
    %10 = tpu.matmul %8, %9, %cst_8 {dimension_numbers = #tpu.dot_dimension_numbers<[1], [0], [0], [1], [0, 0, 1, 1], [], []>} : vector<16x512xbf16>, vector<512x128xbf16>, vector<16x128xf32> -> vector<16x128xf32>
    %c0_9 = arith.constant 0 : index
    %c0_10 = arith.constant 0 : index
    %11 = vector.load %arg5[%c0_9, %c0_10] : memref<1x128xf32, #tpu.memory_space<vmem>>, vector<1x128xf32>
    %12 = vector.broadcast %11 : vector<1x128xf32> to vector<16x128xf32>
    %13 = arith.addf %10, %12 : vector<16x128xf32>
    %cst_11 = arith.constant dense<0xFF800000> : vector<16xf32>
    %14 = vector.multi_reduction <maximumf>, %13, %cst_11 [1] : vector<16x128xf32> to vector<16xf32>
    %15 = vector.shape_cast %14 : vector<16xf32> to vector<16x1xf32>
    %16 = vector.broadcast %15 : vector<16x1xf32> to vector<16x128xf32>
    %17 = arith.subf %13, %16 : vector<16x128xf32>
    %18 = math.exp %17 : vector<16x128xf32>
    %cst_12 = arith.constant dense<0.000000e+00> : vector<16xf32>
    %19 = vector.multi_reduction <add>, %18, %cst_12 [1] : vector<16x128xf32> to vector<16xf32>
    %20 = vector.shape_cast %19 : vector<16xf32> to vector<16x1xf32>
    %21 = math.log %20 : vector<16x1xf32>
    %22 = vector.broadcast %21 : vector<16x1xf32> to vector<16x128xf32>
    %23 = arith.subf %17, %22 : vector<16x128xf32>
    %24 = arith.truncf %23 : vector<16x128xf32> to vector<16x128xbf16>
    %c0_13 = arith.constant 0 : index
    %c0_14 = arith.constant 0 : index
    %25 = vector.load %arg6[%c0_13, %c0_14] : memref<16x128xbf16, #tpu.memory_space<vmem>>, vector<16x128xbf16>
    tpu.vector_store %arg6[%c0_13, %c0_14], %24 {strides = array<i32>} : memref<16x128xbf16, #tpu.memory_space<vmem>>, vector<16x128xbf16>,
    return
  }
  func.func @transform_0(%arg0: i32) -> (i32, i32) {
    %c0_i32 = arith.constant 0 : i32
    %c0_i32_0 = arith.constant 0 : i32
    return %arg0, %c0_i32 : i32, i32
  }
  func.func @transform_1(%arg0: i32) -> (i32, i32) {
    %c0_i32 = arith.constant 0 : i32
    %c0_i32_0 = arith.constant 0 : i32
    %c0_i32_1 = arith.constant 0 : i32
    return %c0_i32, %c0_i32_0 : i32, i32
  }
  func.func @transform_2(%arg0: i32) -> (i32, i32) {
    %c0_i32 = arith.constant 0 : i32
    %c0_i32_0 = arith.constant 0 : i32
    %c0_i32_1 = arith.constant 0 : i32
    return %c0_i32, %c0_i32_0 : i32, i32
  }
  func.func @transform_3(%arg0: i32) -> (i32, i32) {
    %c0_i32 = arith.constant 0 : i32
    %c0_i32_0 = arith.constant 0 : i32
    %c0_i32_1 = arith.constant 0 : i32
    return %c0_i32, %c0_i32_0 : i32, i32
  }
  func.func @transform_4(%arg0: i32) -> (i32, i32) {
    %c0_i32 = arith.constant 0 : i32
    %c0_i32_0 = arith.constant 0 : i32
    %c0_i32_1 = arith.constant 0 : i32
    return %c0_i32, %c0_i32_0 : i32, i32
  }
  func.func @transform_5(%arg0: i32) -> (i32, i32) {
    %c0_i32 = arith.constant 0 : i32
    %c0_i32_0 = arith.constant 0 : i32
    return %arg0, %c0_i32 : i32, i32
  }
}

</mosaic_0001>

<llo_original>
// kernel: bert_head_forward.1
$region0: #{bert_head_forward.1}
  #allocation0 [shape = 'u32[]', space=smem, size = 0x4, offset = 0x4, fixed_abs, tag = 'smem constant byte address 0x4 - core index']
  #allocation1 [shape = 'u32[144,128]{1,0:T(1,128)}', space=vmem, size = 0x12000, scoped, tag = 'internal scratch']
  %s0 = inlined_call_operand.vmem [shape: f32[16,4], index: 0, kind: input, shape index: {}]
  %s1 = inlined_call_operand.vmem [shape: f32[4,512], index: 1, kind: input, shape index: {}]
  %s2 = inlined_call_operand.vmem [shape: f32[1,512], index: 2, kind: input, shape index: {}]
  %s3 = inlined_call_operand.hbm [shape: bf16[512,128], index: 3, kind: input, shape index: {}]
  %s4 = inlined_call_operand.vmem [shape: f32[1,128], index: 4, kind: input, shape index: {}]
  %s5 = inlined_call_operand.vmem [shape: bf16[16,128], index: 5, kind: output, shape index: {}]
  %s6 = sld [smem:[#allocation0]]
  $region34: #{bert_head_forward.1} parent=0
    _
  %s8 = ssub.s32 1, %s6
  %s9 = scalar_select 0, %s8, %s6
  $region1: #{bert_head_forward.1} parent=0
    #allocation2 [shape = 'u8[131072]{0}', space=vmem, size = 0x20000, scoped, tag = 'input window, operand 3, single buffered']
    #allocation3 [shape = 's32[1]{0}', space=sflag, size = 0x4, scoped, tag = 'scoped memory for bert_head_forward.1']
    %10 = vsyncpa [#allocation3], 0
    // Predicated region
    $region2: #{bert_head_forward.1} parent=1 // pred_check
      _
    $region3: #{bert_head_forward.1} parent=1 // pred_check_branch
      %12 = sbr.rel (0) target = $region5
    $region4: #{bert_head_forward.1} parent=1 // pred_region
      _
    $region5: #{bert_head_forward.1} parent=1 // pred_fallthru
      _
    // Predicated region
    $region6: #{bert_head_forward.1} parent=1 // pred_check
      _
    $region7: #{bert_head_forward.1} parent=1 // pred_check_branch
      %14 = sbr.rel (0) target = $region9
    $region8: #{bert_head_forward.1} parent=1 // pred_region
      _
    $region9: #{bert_head_forward.1} parent=1 // pred_fallthru
      _
    // Predicated region
    $region10: #{bert_head_forward.1} parent=1 // pred_check
      _
    $region11: #{bert_head_forward.1} parent=1 // pred_check_branch
      %16 = sbr.rel (0) target = $region13
    $region12: #{bert_head_forward.1} parent=1 // pred_region
      _
    $region13: #{bert_head_forward.1} parent=1 // pred_fallthru
      _
    // Predicated region
    $region14: #{bert_head_forward.1} parent=1 // pred_check
      _
    $region15: #{bert_head_forward.1} parent=1 // pred_check_branch
      %18 = sbr.rel (0) target = $region17
    $region16: #{bert_head_forward.1} parent=1 // pred_region
      %s20 = ssub.s32 4096, 4096
      %21 = vsyncadd [#allocation3], %s20
      %s22 = sshll.u32 [#allocation2], 4
      %s23 = int_to_ptr.vmem [resolvable:$true] %s22
      %28 = dma.hbm_to_vmem [thread:$0]  %s3, 4096, %s23, [#allocation3], 64, 64, 4
    $region17: #{bert_head_forward.1} parent=1 // pred_fallthru
      _
    // Predicated region
    $region18: #{bert_head_forward.1} parent=1 // pred_check
      _
    $region19: #{bert_head_forward.1} parent=1 // pred_check_branch
      %30 = sbr.rel (0) target = $region21
    $region20: #{bert_head_forward.1} parent=1 // pred_region
      _
    $region21: #{bert_head_forward.1} parent=1 // pred_fallthru
      _
    // Predicated region
    $region22: #{bert_head_forward.1} parent=1 // pred_check
      _
    $region23: #{bert_head_forward.1} parent=1 // pred_check_branch
      %32 = sbr.rel (0) target = $region25
    $region24: #{bert_head_forward.1} parent=1 // pred_region
      %33 = dma.done [#allocation3], 4096
    $region25: #{bert_head_forward.1} parent=1 // pred_fallthru
      _
    %v35 = vld [vmem:[%s0] sm:$0xff]
    %v36 = vld [vmem:[%s0 + $0x8] sm:$0xff]
    %v37 = vld [vmem:[%s1] sm:$0xff]
    %v38 = vld [vmem:[%s1 + $0x8] sm:$0xff]
    %v39 = vld [vmem:[%s2] sm:$0xf]
    %v41 = vlaneseq
    %v42 = vshrl.u32 %v41, 7
    %v43 = vsub.s32 0, %v42
    %v44 = vrot.slane %v39, %v43
    %v45 = vlaneseq
    %v46 = vshrl.u32 %v45, 7
    %v47 = vsub.s32 1, %v46
    %v48 = vrot.slane %v39, %v47
    %v49 = vlaneseq
    %v50 = vshrl.u32 %v49, 7
    %v51 = vsub.s32 2, %v50
    %v52 = vrot.slane %v39, %v51
    %v53 = vlaneseq
    %v54 = vshrl.u32 %v53, 7
    %v55 = vsub.s32 3, %v54
    %v56 = vrot.slane %v39, %v55
    %v63 = vcombine.high %v37, %v37
    %v64 = vcombine.high %v38, %v38
    %vm65 = vcmask 31744
    %v67 = vsel %vm65, %v35, 0
    %v70 = vsel %vm65, %v36, 0
    %vm72 = vcmask 1043456
    %v73 = vsel %vm72, %v37, 0
    %v75 = vsel %vm72, %v63, 0
    %v77 = vsel %vm72, %v38, 0
    %v79 = vsel %vm72, %v64, 0
    %81 = vmatprep.subr.mxu0 %v75
    %82 = vmatpush1.msra.mxu0 %v73
    %83 = vmatprep.subr.mxu0 0.0
    %84 = vmatpush1.msra.mxu0 0.0
    %85 = vmatprep.subr.mxu0 0.0
    %86 = vmatpush1.msra.mxu0 0.0
    %87 = vmatprep.subr.mxu0 0.0
    %88 = vmatpush1.msra.mxu0 0.0
    %89 = vmatprep.subr.mxu0 0.0
    %90 = vmatpush1.msra.mxu0 0.0
    %91 = vmatprep.subr.mxu0 0.0
    %92 = vmatpush1.msra.mxu0 0.0
    %93 = vmatprep.subr.mxu0 0.0
    %94 = vmatpush1.msra.mxu0 0.0
    %95 = vmatprep.subr.mxu0 0.0
    %96 = vmatpush1.msra.mxu0 0.0
    %97 = vmatprep.subr.mxu0 0.0
    %98 = vmatpush1.msra.mxu0 0.0
    %99 = vmatprep.subr.mxu0 0.0
    %100 = vmatpush1.msra.mxu0 0.0
    %101 = vmatprep.subr.mxu0 0.0
    %102 = vmatpush1.msra.mxu0 0.0
    %103 = vmatprep.subr.mxu0 0.0
    %104 = vmatpush1.msra.mxu0 0.0
    %105 = vmatprep.subr.mxu0 0.0
    %106 = vmatpush1.msra.mxu0 0.0
    %107 = vmatprep.subr.mxu0 0.0
    %108 = vmatpush1.msra.mxu0 0.0
    %109 = vmatprep.subr.mxu0 0.0
    %110 = vmatpush1.msra.mxu0 0.0
    %111 = vmatprep.subr.mxu0 0.0
    %112 = vmatpush1.msra.mxu0 0.0
    %113 = vmatprep.subr.mxu0 0.0
    %114 = vmatpush1.msra.mxu0 0.0
    %115 = vmatprep.subr.mxu0 0.0
    %116 = vmatpush1.msra.mxu0 0.0
    %117 = vmatprep.subr.mxu0 0.0
    %118 = vmatpush1.msra.mxu0 0.0
    %119 = vmatprep.subr.mxu0 0.0
    %120 = vmatpush1.msra.mxu0 0.0
    %121 = vmatprep.subr.mxu0 0.0
    %122 = vmatpush1.msra.mxu0 0.0
    %123 = vmatprep.subr.mxu0 0.0
    %124 = vmatpush1.msra.mxu0 0.0
    %125 = vmatprep.subr.mxu0 0.0
    %126 = vmatpush1.msra.mxu0 0.0
    %127 = vmatprep.subr.mxu0 0.0
    %128 = vmatpush1.msra.mxu0 0.0
    %129 = vmatprep.subr.mxu0 0.0
    %130 = vmatpush1.msra.mxu0 0.0
    %131 = vmatprep.subr.mxu0 0.0
    %132 = vmatpush1.msra.mxu0 0.0
    %133 = vmatprep.subr.mxu0 0.0
    %134 = vmatpush1.msra.mxu0 0.0
    %135 = vmatprep.subr.mxu0 0.0
    %136 = vmatpush1.msra.mxu0 0.0
    %137 = vmatprep.subr.mxu0 0.0
    %138 = vmatpush1.msra.mxu0 0.0
    %139 = vmatprep.subr.mxu0 0.0
    %140 = vmatpush1.msra.mxu0 0.0
    %141 = vmatprep.subr.mxu0 0.0
    %142 = vmatpush1.msra.mxu0 0.0
    %143 = vmatprep.subr.mxu0 0.0
    %144 = vmatpush1.msra.mxu0 0.0
    %145 = vmatprep.mubr.f32.mxu0 0.0
    %146 = vmatmul.mubr.f32.gmra.mrb[0].mxu0 %v67
    %v147 = vpop.f32.mrb[0].mxu0
    %v148 = vadd.f32 %v44, %v147
    %v149 = vpop.f32.mrb[0].mxu0
    %v150 = vadd.f32 %v48, %v149
    %151 = vmatprep.mubr.f32.mxu0 0.0
    %152 = vmatmul.mubr.f32.gmra.mrb[0].mxu0 %v70
    %v153 = vpop.f32.mrb[0].mxu0
    %v154 = vadd.f32 %v44, %v153
    %v155 = vpop.f32.mrb[0].mxu0
    %v156 = vadd.f32 %v48, %v155
    %157 = vdwg.mxu0
    %158 = vmatprep.subr.mxu0 %v79
    %159 = vmatpush1.msra.mxu0 %v77
    %160 = vmatprep.subr.mxu0 0.0
    %161 = vmatpush1.msra.mxu0 0.0
    %162 = vmatprep.subr.mxu0 0.0
    %163 = vmatpush1.msra.mxu0 0.0
    %164 = vmatprep.subr.mxu0 0.0
    %165 = vmatpush1.msra.mxu0 0.0
    %166 = vmatprep.subr.mxu0 0.0
    %167 = vmatpush1.msra.mxu0 0.0
    %168 = vmatprep.subr.mxu0 0.0
    %169 = vmatpush1.msra.mxu0 0.0
    %170 = vmatprep.subr.mxu0 0.0
    %171 = vmatpush1.msra.mxu0 0.0
    %172 = vmatprep.subr.mxu0 0.0
    %173 = vmatpush1.msra.mxu0 0.0
    %174 = vmatprep.subr.mxu0 0.0
    %175 = vmatpush1.msra.mxu0 0.0
    %176 = vmatprep.subr.mxu0 0.0
    %177 = vmatpush1.msra.mxu0 0.0
    %178 = vmatprep.subr.mxu0 0.0
    %179 = vmatpush1.msra.mxu0 0.0
    %180 = vmatprep.subr.mxu0 0.0
    %181 = vmatpush1.msra.mxu0 0.0
    %182 = vmatprep.subr.mxu0 0.0
    %183 = vmatpush1.msra.mxu0 0.0
    %184 = vmatprep.subr.mxu0 0.0
    %185 = vmatpush1.msra.mxu0 0.0
    %186 = vmatprep.subr.mxu0 0.0
    %187 = vmatpush1.msra.mxu0 0.0
    %188 = vmatprep.subr.mxu0 0.0
    %189 = vmatpush1.msra.mxu0 0.0
    %190 = vmatprep.subr.mxu0 0.0
    %191 = vmatpush1.msra.mxu0 0.0
    %192 = vmatprep.subr.mxu0 0.0
    %193 = vmatpush1.msra.mxu0 0.0
    %194 = vmatprep.subr.mxu0 0.0
    %195 = vmatpush1.msra.mxu0 0.0
    %196 = vmatprep.subr.mxu0 0.0
    %197 = vmatpush1.msra.mxu0 0.0
    %198 = vmatprep.subr.mxu0 0.0
    %199 = vmatpush1.msra.mxu0 0.0
    %200 = vmatprep.subr.mxu0 0.0
    %201 = vmatpush1.msra.mxu0 0.0
    %202 = vmatprep.subr.mxu0 0.0
    %203 = vmatpush1.msra.mxu0 0.0
    %204 = vmatprep.subr.mxu0 0.0
    %205 = vmatpush1.msra.mxu0 0.0
    %206 = vmatprep.subr.mxu0 0.0
    %207 = vmatpush1.msra.mxu0 0.0
    %208 = vmatprep.subr.mxu0 0.0
    %209 = vmatpush1.msra.mxu0 0.0
    %210 = vmatprep.subr.mxu0 0.0
    %211 = vmatpush1.msra.mxu0 0.0
    %212 = vmatprep.subr.mxu0 0.0
    %213 = vmatpush1.msra.mxu0 0.0
    %214 = vmatprep.subr.mxu0 0.0
    %215 = vmatpush1.msra.mxu0 0.0
    %216 = vmatprep.subr.mxu0 0.0
    %217 = vmatpush1.msra.mxu0 0.0
    %218 = vmatprep.subr.mxu0 0.0
    %219 = vmatpush1.msra.mxu0 0.0
    %220 = vmatprep.subr.mxu0 0.0
    %221 = vmatpush1.msra.mxu0 0.0
    %222 = vmatprep.mubr.f32.mxu0 0.0
    %223 = vmatmul.mubr.f32.gmra.mrb[0].mxu0 %v67
    %v224 = vpop.f32.mrb[0].mxu0
    %v225 = vadd.f32 %v52, %v224
    %v226 = vpop.f32.mrb[0].mxu0
    %v227 = vadd.f32 %v56, %v226
    %228 = vmatprep.mubr.f32.mxu0 0.0
    %229 = vmatmul.mubr.f32.gmra.mrb[0].mxu0 %v70
    %v230 = vpop.f32.mrb[0].mxu0
    %v231 = vadd.f32 %v52, %v230
    %v232 = vpop.f32.mrb[0].mxu0
    %v233 = vadd.f32 %v56, %v232
    %234 = vdwg.mxu0
    %v235 = vmax.f32 %v148, 0.0
    %v236 = vmax.f32 %v150, 0.0
    %v237 = vmax.f32 %v225, 0.0
    %v238 = vmax.f32 %v227, 0.0
    %v239 = vmax.f32 %v154, 0.0
    %v240 = vmax.f32 %v156, 0.0
    %v241 = vmax.f32 %v231, 0.0
    %v242 = vmax.f32 %v233, 0.0
    %v243 = vpack.c.bf16 %v239, %v235
    %v244 = vpack.c.bf16 %v240, %v236
    %v245 = vpack.c.bf16 %v241, %v237
    %v246 = vpack.c.bf16 %v242, %v238
    %v247 = vld [vmem:[#allocation2] sm:$0xf]
    %v248 = vld [vmem:[#allocation2 + $0x4] sm:$0xf]
    %v249 = vld [vmem:[#allocation2 + $0x8] sm:$0xf]
    %v250 = vld [vmem:[#allocation2 + $0xc] sm:$0xf]
    %v251 = vld [vmem:[#allocation2 + $0x10] sm:$0xf]
    %v252 = vld [vmem:[#allocation2 + $0x14] sm:$0xf]
    %v253 = vld [vmem:[#allocation2 + $0x18] sm:$0xf]
    %v254 = vld [vmem:[#allocation2 + $0x1c] sm:$0xf]
    %v255 = vld [vmem:[#allocation2 + $0x20] sm:$0xf]
    %v256 = vld [vmem:[#allocation2 + $0x24] sm:$0xf]
    %v257 = vld [vmem:[#allocation2 + $0x28] sm:$0xf]
    %v258 = vld [vmem:[#allocation2 + $0x2c] sm:$0xf]
    %v259 = vld [vmem:[#allocation2 + $0x30] sm:$0xf]
    %v260 = vld [vmem:[#allocation2 + $0x34] sm:$0xf]
    %v261 = vld [vmem:[#allocation2 + $0x38] sm:$0xf]
    %v262 = vld [vmem:[#allocation2 + $0x3c] sm:$0xf]
    %v263 = vld [vmem:[#allocation2 + $0x40] sm:$0xf]
    %v264 = vld [vmem:[#allocation2 + $0x44] sm:$0xf]
    %v265 = vld [vmem:[#allocation2 + $0x48] sm:$0xf]
    %v266 = vld [vmem:[#allocation2 + $0x4c] sm:$0xf]
    %v267 = vld [vmem:[#allocation2 + $0x50] sm:$0xf]
    %v268 = vld [vmem:[#allocation2 + $0x54] sm:$0xf]
    %v269 = vld [vmem:[#allocation2 + $0x58] sm:$0xf]
    %v270 = vld [vmem:[#allocation2 + $0x5c] sm:$0xf]
    %v271 = vld [vmem:[#allocation2 + $0x60] sm:$0xf]
    %v272 = vld [vmem:[#allocation2 + $0x64] sm:$0xf]
    %v273 = vld [vmem:[#allocation2 + $0x68] sm:$0xf]
    %v274 = vld [vmem:[#allocation2 + $0x6c] sm:$0xf]
    %v275 = vld [vmem:[#allocation2 + $0x70] sm:$0xf]
    %v276 = vld [vmem:[#allocation2 + $0x74] sm:$0xf]
    %v277 = vld [vmem:[#allocation2 + $0x78] sm:$0xf]
    %v278 = vld [vmem:[#allocation2 + $0x7c] sm:$0xf]
    %v279 = vld [vmem:[#allocation2 + $0x80] sm:$0xf]
    %v280 = vld [vmem:[#allocation2 + $0x84] sm:$0xf]
    %v281 = vld [vmem:[#allocation2 + $0x88] sm:$0xf]
    %v282 = vld [vmem:[#allocation2 + $0x8c] sm:$0xf]
    %v283 = vld [vmem:[#allocation2 + $0x90] sm:$0xf]
    %v284 = vld [vmem:[#allocation2 + $0x94] sm:$0xf]
    %v285 = vld [vmem:[#allocation2 + $0x98] sm:$0xf]
    %v286 = vld [vmem:[#allocation2 + $0x9c] sm:$0xf]
    %v287 = vld [vmem:[#allocation2 + $0xa0] sm:$0xf]
    %v288 = vld [vmem:[#allocation2 + $0xa4] sm:$0xf]
    %v289 = vld [vmem:[#allocation2 + $0xa8] sm:$0xf]
    %v290 = vld [vmem:[#allocation2 + $0xac] sm:$0xf]
    %v291 = vld [vmem:[#allocation2 + $0xb0] sm:$0xf]
    %v292 = vld [vmem:[#allocation2 + $0xb4] sm:$0xf]
    %v293 = vld [vmem:[#allocation2 + $0xb8] sm:$0xf]
    %v294 = vld [vmem:[#allocation2 + $0xbc] sm:$0xf]
    %v295 = vld [vmem:[#allocation2 + $0xc0] sm:$0xf]
    %v296 = vld [vmem:[#allocation2 + $0xc4] sm:$0xf]
    %v297 = vld [vmem:[#allocation2 + $0xc8] sm:$0xf]
    %v298 = vld [vmem:[#allocation2 + $0xcc] sm:$0xf]
    %v299 = vld [vmem:[#allocation2 + $0xd0] sm:$0xf]
    %v300 = vld [vmem:[#allocation2 + $0xd4] sm:$0xf]
    %v301 = vld [vmem:[#allocation2 + $0xd8] sm:$0xf]
    %v302 = vld [vmem:[#allocation2 + $0xdc] sm:$0xf]
    %v303 = vld [vmem:[#allocation2 + $0xe0] sm:$0xf]
    %v304 = vld [vmem:[#allocation2 + $0xe4] sm:$0xf]
    %v305 = vld [vmem:[#allocation2 + $0xe8] sm:$0xf]
    %v306 = vld [vmem:[#allocation2 + $0xec] sm:$0xf]
    %v307 = vld [vmem:[#allocation2 + $0xf0] sm:$0xf]
    %v308 = vld [vmem:[#allocation2 + $0xf4] sm:$0xf]
    %v309 = vld [vmem:[#allocation2 + $0xf8] sm:$0xf]
    %v310 = vld [vmem:[#allocation2 + $0xfc] sm:$0xf]
    %v311 = vld [vmem:[%s4] sm:$0x1]
    %v313 = vlaneseq
    %v314 = vshrl.u32 %v313, 7
    %v315 = vsub.s32 0, %v314
    %v316 = vrot.slane %v311, %v315
    %v382 = vunpack.c.l.b16 %v247
    %v383 = vunpack.c.l.b16 %v248
    %v384 = vunpack.c.l.b16 %v249
    %v385 = vunpack.c.l.b16 %v250
    %v386 = vunpack.c.l.b16 %v251
    %v387 = vunpack.c.l.b16 %v252
    %v388 = vunpack.c.l.b16 %v253
    %v389 = vunpack.c.l.b16 %v254
    %v390 = vunpack.c.l.b16 %v255
    %v391 = vunpack.c.l.b16 %v256
    %v392 = vunpack.c.l.b16 %v257
    %v393 = vunpack.c.l.b16 %v258
    %v394 = vunpack.c.l.b16 %v259
    %v395 = vunpack.c.l.b16 %v260
    %v396 = vunpack.c.l.b16 %v261
    %v397 = vunpack.c.l.b16 %v262
    %v398 = vunpack.c.l.b16 %v263
    %v399 = vunpack.c.l.b16 %v264
    %v400 = vunpack.c.l.b16 %v265
    %v401 = vunpack.c.l.b16 %v266
    %v402 = vunpack.c.l.b16 %v267
    %v403 = vunpack.c.l.b16 %v268
    %v404 = vunpack.c.l.b16 %v269
    %v405 = vunpack.c.l.b16 %v270
    %v406 = vunpack.c.l.b16 %v271
    %v407 = vunpack.c.l.b16 %v272
    %v408 = vunpack.c.l.b16 %v273
    %v409 = vunpack.c.l.b16 %v274
    %v410 = vunpack.c.l.b16 %v275
    %v411 = vunpack.c.l.b16 %v276
    %v412 = vunpack.c.l.b16 %v277
    %v413 = vunpack.c.l.b16 %v278
    %v414 = vunpack.c.l.b16 %v279
    %v415 = vunpack.c.l.b16 %v280
    %v416 = vunpack.c.l.b16 %v281
    %v417 = vunpack.c.l.b16 %v282
    %v418 = vunpack.c.l.b16 %v283
    %v419 = vunpack.c.l.b16 %v284
    %v420 = vunpack.c.l.b16 %v285
    %v421 = vunpack.c.l.b16 %v286
    %v422 = vunpack.c.l.b16 %v287
    %v423 = vunpack.c.l.b16 %v288
    %v424 = vunpack.c.l.b16 %v289
    %v425 = vunpack.c.l.b16 %v290
    %v426 = vunpack.c.l.b16 %v291
    %v427 = vunpack.c.l.b16 %v292
    %v428 = vunpack.c.l.b16 %v293
    %v429 = vunpack.c.l.b16 %v294
    %v430 = vunpack.c.l.b16 %v295
    %v431 = vunpack.c.l.b16 %v296
    %v432 = vunpack.c.l.b16 %v297
    %v433 = vunpack.c.l.b16 %v298
    %v434 = vunpack.c.l.b16 %v299
    %v435 = vunpack.c.l.b16 %v300
    %v436 = vunpack.c.l.b16 %v301
    %v437 = vunpack.c.l.b16 %v302
    %v438 = vunpack.c.l.b16 %v303
    %v439 = vunpack.c.l.b16 %v304
    %v440 = vunpack.c.l.b16 %v305
    %v441 = vunpack.c.l.b16 %v306
    %v442 = vunpack.c.l.b16 %v307
    %v443 = vunpack.c.l.b16 %v308
    %v444 = vunpack.c.l.b16 %v309
    %v445 = vunpack.c.l.b16 %v310
    %v446 = vpack.c.b16 %v383, %v382
    %v447 = vpack.c.b16 %v385, %v384
    %v448 = vpack.c.b16 %v387, %v386
    %v449 = vpack.c.b16 %v389, %v388
    %v450 = vpack.c.b16 %v391, %v390
    %v451 = vpack.c.b16 %v393, %v392
    %v452 = vpack.c.b16 %v395, %v394
    %v453 = vpack.c.b16 %v397, %v396
    %v454 = vpack.c.b16 %v399, %v398
    %v455 = vpack.c.b16 %v401, %v400
    %v456 = vpack.c.b16 %v403, %v402
    %v457 = vpack.c.b16 %v405, %v404
    %v458 = vpack.c.b16 %v407, %v406
    %v459 = vpack.c.b16 %v409, %v408
    %v460 = vpack.c.b16 %v411, %v410
    %v461 = vpack.c.b16 %v413, %v412
    %v462 = vpack.c.b16 %v415, %v414
    %v463 = vpack.c.b16 %v417, %v416
    %v464 = vpack.c.b16 %v419, %v418
    %v465 = vpack.c.b16 %v421, %v420
    %v466 = vpack.c.b16 %v423, %v422
    %v467 = vpack.c.b16 %v425, %v424
    %v468 = vpack.c.b16 %v427, %v426
    %v469 = vpack.c.b16 %v429, %v428
    %v470 = vpack.c.b16 %v431, %v430
    %v471 = vpack.c.b16 %v433, %v432
    %v472 = vpack.c.b16 %v435, %v434
    %v473 = vpack.c.b16 %v437, %v436
    %v474 = vpack.c.b16 %v439, %v438
    %v475 = vpack.c.b16 %v441, %v440
    %v476 = vpack.c.b16 %v443, %v442
    %v477 = vpack.c.b16 %v445, %v444
    %510 = vmatprep.subr.bf16.mxu0 0
    %511 = vmatpush1.bf16.msra.mxu0 %v446
    %512 = vmatprep.subr.bf16.mxu0 0
    %513 = vmatpush1.bf16.msra.mxu0 %v447
    %514 = vmatprep.subr.bf16.mxu0 0
    %515 = vmatpush1.bf16.msra.mxu0 %v448
    %516 = vmatprep.subr.bf16.mxu0 0
    %517 = vmatpush1.bf16.msra.mxu0 %v449
    %518 = vmatprep.subr.bf16.mxu0 0
    %519 = vmatpush1.bf16.msra.mxu0 %v450
    %520 = vmatprep.subr.bf16.mxu0 0
    %521 = vmatpush1.bf16.msra.mxu0 %v451
    %522 = vmatprep.subr.bf16.mxu0 0
    %523 = vmatpush1.bf16.msra.mxu0 %v452
    %524 = vmatprep.subr.bf16.mxu0 0
    %525 = vmatpush1.bf16.msra.mxu0 %v453
    %526 = vmatprep.subr.bf16.mxu0 0
    %527 = vmatpush1.bf16.msra.mxu0 %v454
    %528 = vmatprep.subr.bf16.mxu0 0
    %529 = vmatpush1.bf16.msra.mxu0 %v455
    %530 = vmatprep.subr.bf16.mxu0 0
    %531 = vmatpush1.bf16.msra.mxu0 %v456
    %532 = vmatprep.subr.bf16.mxu0 0
    %533 = vmatpush1.bf16.msra.mxu0 %v457
    %534 = vmatprep.subr.bf16.mxu0 0
    %535 = vmatpush1.bf16.msra.mxu0 %v458
    %536 = vmatprep.subr.bf16.mxu0 0
    %537 = vmatpush1.bf16.msra.mxu0 %v459
    %538 = vmatprep.subr.bf16.mxu0 0
    %539 = vmatpush1.bf16.msra.mxu0 %v460
    %540 = vmatprep.subr.bf16.mxu0 0
    %541 = vmatpush1.bf16.msra.mxu0 %v461
    %542 = vmatprep.mubr.bf16.mxu0 %v244
    %543 = vmatmul.mubr.bf16.gmra.mrb[0].mxu0 %v243
    %v544 = vpop.f32.mrb[0].mxu0
    %v545 = vadd.f32 %v316, %v544
    %v546 = vpop.f32.mrb[0].mxu0
    %v547 = vpop.f32.mrb[0].mxu0
    %v548 = vadd.f32 %v316, %v547
    %v549 = vpop.f32.mrb[0].mxu0
    %550 = vdwg.mxu0
    %551 = vmatprep.subr.bf16.mxu0 0
    %552 = vmatpush1.bf16.msra.mxu0 %v462
    %553 = vmatprep.subr.bf16.mxu0 0
    %554 = vmatpush1.bf16.msra.mxu0 %v463
    %555 = vmatprep.subr.bf16.mxu0 0
    %556 = vmatpush1.bf16.msra.mxu0 %v464
    %557 = vmatprep.subr.bf16.mxu0 0
    %558 = vmatpush1.bf16.msra.mxu0 %v465
    %559 = vmatprep.subr.bf16.mxu0 0
    %560 = vmatpush1.bf16.msra.mxu0 %v466
    %561 = vmatprep.subr.bf16.mxu0 0
    %562 = vmatpush1.bf16.msra.mxu0 %v467
    %563 = vmatprep.subr.bf16.mxu0 0
    %564 = vmatpush1.bf16.msra.mxu0 %v468
    %565 = vmatprep.subr.bf16.mxu0 0
    %566 = vmatpush1.bf16.msra.mxu0 %v469
    %567 = vmatprep.subr.bf16.mxu0 0
    %568 = vmatpush1.bf16.msra.mxu0 %v470
    %569 = vmatprep.subr.bf16.mxu0 0
    %570 = vmatpush1.bf16.msra.mxu0 %v471
    %571 = vmatprep.subr.bf16.mxu0 0
    %572 = vmatpush1.bf16.msra.mxu0 %v472
    %573 = vmatprep.subr.bf16.mxu0 0
    %574 = vmatpush1.bf16.msra.mxu0 %v473
    %575 = vmatprep.subr.bf16.mxu0 0
    %576 = vmatpush1.bf16.msra.mxu0 %v474
    %577 = vmatprep.subr.bf16.mxu0 0
    %578 = vmatpush1.bf16.msra.mxu0 %v475
    %579 = vmatprep.subr.bf16.mxu0 0
    %580 = vmatpush1.bf16.msra.mxu0 %v476
    %581 = vmatprep.subr.bf16.mxu0 0
    %582 = vmatpush1.bf16.msra.mxu0 %v477
    %583 = vmatprep.mubr.bf16.mxu0 %v246
    %584 = vmatmul.mubr.bf16.gmra.mrb[0].mxu0 %v245
    %v585 = vpop.f32.mrb[0].mxu0
    %v586 = vadd.f32 %v545, %v585
    %v587 = vpop.f32.mrb[0].mxu0
    %v588 = vpop.f32.mrb[0].mxu0
    %v589 = vadd.f32 %v548, %v588
    %v590 = vpop.f32.mrb[0].mxu0
    %591 = vdwg.mxu0
    %592 = vmax.xlane.f32.xlu0 %v586
    %v593 = vpop.xlane.xlu0 %592
    %594 = vmax.xlane.f32.xlu0 %v589
    %v595 = vpop.xlane.xlu0 %594
    %v596 = vsub.f32 %v586, %v593
    %v597 = vsub.f32 %v589, %v595
    %v598 = vmul.f32 %v596, 1.442695
    %v599 = vpow.pop %v598
    %v600 = vmul.f32 %v597, 1.442695
    %v601 = vpow.pop %v600
    %602 = vadd.xlane.f32.xlu0 %v599
    %v603 = vpop.xlane.xlu0 %602
    %604 = vadd.xlane.f32.xlu0 %v601
    %v605 = vpop.xlane.xlu0 %604
    %v606 = vlog2.pop %v603
    %v607 = vmul.f32 %v606, 0.6931472
    %v608 = vlog2.pop %v605
    %v609 = vmul.f32 %v608, 0.6931472
    %v610 = vsub.f32 %v596, %v607
    %v611 = vsub.f32 %v597, %v609
    %v612 = vpack.c.bf16 %v611, %v610
    %v614 = vunpack.c.l.b16 %v612
    %v615 = vunpack.c.h.b16 %v612
    %v616 = vpack.c.b16 %v614, %v614
    %v617 = vpack.c.b16 %v615, %v615
    %620 = vst [vmem:[%s5] sm:$0xf] %v616
    %621 = vst [vmem:[%s5 + $0x4] sm:$0xf] %v617
    // Predicated region
    $region26: #{bert_head_forward.1} parent=1 // pred_check
      _
    $region27: #{bert_head_forward.1} parent=1 // pred_check_branch
      %623 = sbr.rel (0) target = $region29
    $region28: #{bert_head_forward.1} parent=1 // pred_region
      _
    $region29: #{bert_head_forward.1} parent=1 // pred_fallthru
      _
    // Predicated region
    $region30: #{bert_head_forward.1} parent=1 // pred_check
      _
    $region31: #{bert_head_forward.1} parent=1 // pred_check_branch
      %625 = sbr.rel (0) target = $region33
    $region32: #{bert_head_forward.1} parent=1 // pred_region
      _
    $region33: #{bert_head_forward.1} parent=1 // pred_fallthru
      _
    %626 = vsyncpa [#allocation3], 1

</llo_original>
